<compile_context>
chip_gen: v7x
topology: tpu7x:2x2x1
jax: 0.10.0
libtpu: 0.0.40
codegen_flags: <defaults>
</compile_context>

<pallas_src>
import functools

import jax
import jax.numpy as jnp
from jax.experimental import pallas as pl
from jax.experimental.pallas import tpu as pltpu

_NEG_INF = -1e30  # finite "minus infinity": avoids inf-inf NaNs with padded columns


def _round_up(x, m):
    return (x + m - 1) // m * m


def mlm_kernel(x_ref, w_ref, b_ref, o_ref, m_ref, l_ref):
    """One (row-tile, pass, vocab-tile) grid step.

    x_ref: (tm, hidden)          w_ref: (hidden, tn)
    b_ref: (1, tn) f32           o_ref: (tm, tn)
    m_ref, l_ref: (tm, 1) f32 running max / running sum-of-exp scratch.
    """
    p = pl.program_id(1)  # 0: accumulate (max, sum-exp) stats; 1: write normalized output
    v = pl.program_id(2)

    # MXU matmul with f32 accumulation; bias add and softmax math stay in f32.
    logits = (
        jnp.dot(x_ref[...], w_ref[...], preferred_element_type=jnp.float32)
        + b_ref[...]
    )

    @pl.when(p == 0)
    def _stats_pass():
        @pl.when(v == 0)
        def _init():
            m_ref[...] = jnp.full(m_ref.shape, _NEG_INF, m_ref.dtype)
            l_ref[...] = jnp.zeros(l_ref.shape, l_ref.dtype)

        m_prev = m_ref[...]
        m_new = jnp.maximum(m_prev, jnp.max(logits, axis=-1, keepdims=True))
        l_ref[...] = l_ref[...] * jnp.exp(m_prev - m_new) + jnp.sum(
            jnp.exp(logits - m_new), axis=-1, keepdims=True
        )
        m_ref[...] = m_new

    @pl.when(p == 1)
    def _output_pass():
        lse = m_ref[...] + jnp.log(l_ref[...])  # (tm, 1), broadcasts over the vocab tile
        o_ref[...] = (logits - lse).astype(o_ref.dtype)


@functools.partial(
    jax.jit,
    static_argnames=("tm", "tn", "compute_dtype", "out_dtype", "vmem_limit_bytes"),
)
def masked_language_model(
    x,
    w,
    b,
    *,
    tm=512,
    tn=512,
    compute_dtype=jnp.bfloat16,
    out_dtype=jnp.float32,
    vmem_limit_bytes=None,
):
    """log_softmax(x @ w.T + b, axis=-1).

    x: [batch, seq, hidden]   w: [vocab, hidden] (PyTorch nn.Linear layout)   b: [vocab]
    Returns [batch, seq, vocab] in `out_dtype`.
    """
    batch, seq, hidden = x.shape
    vocab = w.shape[0]
    M = batch * seq

    # Row tile multiple of 16 (bf16 sublane packing), vocab tile multiple of 128
    # (lane-dense stores); clamp to the (padded) problem size.
    tm = _round_up(max(tm, 16), 16)
    tn = _round_up(max(tn, 128), 128)
    tm_eff = min(tm, _round_up(M, 16))
    tn_eff = min(tn, _round_up(vocab, 128))
    Mp = _round_up(M, tm_eff)
    Vp = _round_up(vocab, tn_eff)
    n_m, n_v = Mp // tm_eff, Vp // tn_eff

    x2d = x.reshape(M, hidden).astype(compute_dtype)
    if Mp != M:
        x2d = jnp.pad(x2d, ((0, Mp - M), (0, 0)))
    w_t = w.T.astype(compute_dtype)  # (hidden, vocab)
    b2d = b.astype(jnp.float32).reshape(1, vocab)
    if Vp != vocab:
        w_t = jnp.pad(w_t, ((0, 0), (0, Vp - vocab)))
        # Padded vocab columns get a huge negative bias so they never win the max
        # and contribute exp(...) == 0 to the normalizer.
        b2d = jnp.pad(b2d, ((0, 0), (0, Vp - vocab)), constant_values=_NEG_INF)

    grid = (n_m, 2, n_v)

    out2d = pl.pallas_call(
        mlm_kernel,
        out_shape=jax.ShapeDtypeStruct((Mp, Vp), out_dtype),
        grid_spec=pltpu.PrefetchScalarGridSpec(
            num_scalar_prefetch=0,
            grid=grid,
            in_specs=[
                pl.BlockSpec((tm_eff, hidden), lambda i, p, v: (i, 0)),
                pl.BlockSpec((hidden, tn_eff), lambda i, p, v: (0, v)),
                pl.BlockSpec((1, tn_eff), lambda i, p, v: (0, v)),
            ],
            # During the stats pass (p == 0) the output block index is pinned to
            # (i, 0) so nothing unwritten is ever flushed; during the output pass
            # it walks (i, v) and each block is written exactly once.
            out_specs=pl.BlockSpec((tm_eff, tn_eff), lambda i, p, v: (i, p * v)),
            scratch_shapes=[
                pltpu.VMEM((tm_eff, 1), jnp.float32),  # running row max
                pltpu.VMEM((tm_eff, 1), jnp.float32),  # running sum of exp
            ],
        ),
        compiler_params=pltpu.CompilerParams(
            dimension_semantics=("parallel", "arbitrary", "arbitrary"),
            vmem_limit_bytes=vmem_limit_bytes,
        ),
    )(x2d, w_t, b2d)

    return out2d[:M, :vocab].reshape(batch, seq, vocab)


if __name__ == "__main__":
    # TODO(synk): BERTLM's BERT encoder backbone and the optional NextSentencePrediction
    # head (has_next=True) are external to this file's source; only the
    # MaskedLanguageModel head (Linear(hidden, vocab) + LogSoftmax) is implemented.
    batch, seq, hidden, vocab = 4, 8, 32, 1000  # vocab deliberately not a multiple of 128

    key = jax.random.PRNGKey(0)
    kx, kw, kb = jax.random.split(key, 3)
    x = jax.random.normal(kx, (batch, seq, hidden), dtype=jnp.float32)
    bound = 1.0 / (hidden ** 0.5)  # nn.Linear default init range
    w = jax.random.uniform(kw, (vocab, hidden), minval=-bound, maxval=bound, dtype=jnp.float32)
    b = jax.random.uniform(kb, (vocab,), minval=-bound, maxval=bound, dtype=jnp.float32)

    out = jax.block_until_ready(masked_language_model(x, w, b))
    # Exercise multi-tile grids on both the row and the vocab axis.
    out_tiled = jax.block_until_ready(masked_language_model(x, w, b, tm=16, tn=128))

    # Reference with matching matmul numerics (bf16 inputs, f32 accumulation).
    xb = x.reshape(batch * seq, hidden).astype(jnp.bfloat16)
    wb = w.T.astype(jnp.bfloat16)
    logits_ref = jnp.dot(xb, wb, preferred_element_type=jnp.float32) + b
    ref = jax.nn.log_softmax(logits_ref, axis=-1).reshape(batch, seq, vocab)

    assert out.shape == (batch, seq, vocab)
    assert jnp.allclose(out, ref, atol=2e-3, rtol=2e-3), float(jnp.max(jnp.abs(out - ref)))
    assert jnp.allclose(out_tiled, ref, atol=2e-3, rtol=2e-3), float(
        jnp.max(jnp.abs(out_tiled - ref))
    )

    # Loose sanity check against the pure-f32 reference (inputs are bf16 on the MXU).
    ref_f32 = jax.nn.log_softmax(x @ w.T + b, axis=-1)
    assert jnp.allclose(out, ref_f32, atol=5e-2, rtol=5e-2)

    print("KERNEL_OK")
</pallas_src>

<mosaic_0001>
module attributes {stable_mosaic.version = 11 : i64} {
  func.func @mlm_kernel(%arg0: i32, %arg1: i32, %arg2: i32, %arg3: memref<32x32xbf16, #tpu.memory_space<vmem>>, %arg4: memref<32x512xbf16, #tpu.memory_space<vmem>>, %arg5: memref<1x512xf32, #tpu.memory_space<vmem>>, %arg6: memref<32x512xf32, #tpu.memory_space<vmem>>, %arg7: memref<32x1xf32, #tpu.memory_space<vmem>>, %arg8: memref<32x1xf32, #tpu.memory_space<vmem>>) attributes {dimension_semantics = [#tpu.dimension_semantics<parallel>, #tpu.dimension_semantics<arbitrary>, #tpu.dimension_semantics<arbitrary>], iteration_bounds = array<i64: 1, 2, 2>, scalar_prefetch = 0 : i64, scratch_operands = 2 : i64, tpu.core_type = #tpu.core_type<tc>, window_params = [{transform_indices = @transform_0, window_bounds = array<i64: 32, 32>}, {transform_indices = @transform_1, window_bounds = array<i64: 32, 512>}, {transform_indices = @transform_2, window_bounds = array<i64: 1, 512>}, {transform_indices = @transform_3, window_bounds = array<i64: 32, 512>}]} {
    %c0 = arith.constant 0 : index
    %c0_0 = arith.constant 0 : index
    %0 = vector.load %arg3[%c0, %c0_0] : memref<32x32xbf16, #tpu.memory_space<vmem>>, vector<32x32xbf16>
    %c0_1 = arith.constant 0 : index
    %c0_2 = arith.constant 0 : index
    %1 = vector.load %arg4[%c0_1, %c0_2] : memref<32x512xbf16, #tpu.memory_space<vmem>>, vector<32x512xbf16>
    %cst = arith.constant dense<0.000000e+00> : vector<32x512xf32>
    %2 = tpu.matmul %0, %1, %cst {dimension_numbers = #tpu.dot_dimension_numbers<[1], [0], [0], [1], [0, 0, 1, 1], [], []>} : vector<32x32xbf16>, vector<32x512xbf16>, vector<32x512xf32> -> vector<32x512xf32>
    %c0_3 = arith.constant 0 : index
    %c0_4 = arith.constant 0 : index
    %3 = vector.load %arg5[%c0_3, %c0_4] : memref<1x512xf32, #tpu.memory_space<vmem>>, vector<1x512xf32>
    %4 = vector.broadcast %3 : vector<1x512xf32> to vector<32x512xf32>
    %5 = arith.addf %2, %4 : vector<32x512xf32>
    %c0_i32 = arith.constant 0 : i32
    %6 = arith.cmpi eq, %arg1, %c0_i32 : i32
    %7 = arith.extui %6 : i1 to i32
    %c0_i32_5 = arith.constant 0 : i32
    %8 = arith.cmpi ne, %7, %c0_i32_5 : i32
    scf.if %8 {
      %c0_i32_7 = arith.constant 0 : i32
      %12 = arith.cmpi eq, %arg2, %c0_i32_7 : i32
      %13 = arith.extui %12 : i1 to i32
      %c0_i32_8 = arith.constant 0 : i32
      %14 = arith.cmpi ne, %13, %c0_i32_8 : i32
      scf.if %14 {
        %cst_19 = arith.constant -1.000000e+30 : f32
        %31 = vector.broadcast %cst_19 : f32 to vector<32x1xf32>
        %c0_20 = arith.constant 0 : index
        %c0_21 = arith.constant 0 : index
        %32 = vector.load %arg7[%c0_20, %c0_21] : memref<32x1xf32, #tpu.memory_space<vmem>>, vector<32x1xf32>
        tpu.vector_store %arg7[%c0_20, %c0_21], %31 {strides = array<i32>} : memref<32x1xf32, #tpu.memory_space<vmem>>, vector<32x1xf32>,
        %cst_22 = arith.constant 0.000000e+00 : f32
        %33 = vector.broadcast %cst_22 : f32 to vector<32x1xf32>
        %c0_23 = arith.constant 0 : index
        %c0_24 = arith.constant 0 : index
        %34 = vector.load %arg8[%c0_23, %c0_24] : memref<32x1xf32, #tpu.memory_space<vmem>>, vector<32x1xf32>
        tpu.vector_store %arg8[%c0_23, %c0_24], %33 {strides = array<i32>} : memref<32x1xf32, #tpu.memory_space<vmem>>, vector<32x1xf32>,
      } else {
      }
      %c0_9 = arith.constant 0 : index
      %c0_10 = arith.constant 0 : index
      %15 = vector.load %arg7[%c0_9, %c0_10] : memref<32x1xf32, #tpu.memory_space<vmem>>, vector<32x1xf32>
      %cst_11 = arith.constant dense<0xFF800000> : vector<32xf32>
      %16 = vector.multi_reduction <maximumf>, %5, %cst_11 [1] : vector<32x512xf32> to vector<32xf32>
      %17 = vector.shape_cast %16 : vector<32xf32> to vector<32x1xf32>
      %18 = arith.maximumf %15, %17 : vector<32x1xf32>
      %c0_12 = arith.constant 0 : index
      %c0_13 = arith.constant 0 : index
      %19 = vector.load %arg8[%c0_12, %c0_13] : memref<32x1xf32, #tpu.memory_space<vmem>>, vector<32x1xf32>
      %20 = arith.subf %15, %18 : vector<32x1xf32>
      %21 = math.exp %20 : vector<32x1xf32>
      %22 = arith.mulf %19, %21 : vector<32x1xf32>
      %23 = vector.broadcast %18 : vector<32x1xf32> to vector<32x512xf32>
      %24 = arith.subf %5, %23 : vector<32x512xf32>
      %25 = math.exp %24 : vector<32x512xf32>
      %cst_14 = arith.constant dense<0.000000e+00> : vector<32xf32>
      %26 = vector.multi_reduction <add>, %25, %cst_14 [1] : vector<32x512xf32> to vector<32xf32>
      %27 = vector.shape_cast %26 : vector<32xf32> to vector<32x1xf32>
      %28 = arith.addf %22, %27 : vector<32x1xf32>
      %c0_15 = arith.constant 0 : index
      %c0_16 = arith.constant 0 : index
      %29 = vector.load %arg8[%c0_15, %c0_16] : memref<32x1xf32, #tpu.memory_space<vmem>>, vector<32x1xf32>
      tpu.vector_store %arg8[%c0_15, %c0_16], %28 {strides = array<i32>} : memref<32x1xf32, #tpu.memory_space<vmem>>, vector<32x1xf32>,
      %c0_17 = arith.constant 0 : index
      %c0_18 = arith.constant 0 : index
      %30 = vector.load %arg7[%c0_17, %c0_18] : memref<32x1xf32, #tpu.memory_space<vmem>>, vector<32x1xf32>
      tpu.vector_store %arg7[%c0_17, %c0_18], %18 {strides = array<i32>} : memref<32x1xf32, #tpu.memory_space<vmem>>, vector<32x1xf32>,
    } else {
    }
    %c1_i32 = arith.constant 1 : i32
    %9 = arith.cmpi eq, %arg1, %c1_i32 : i32
    %10 = arith.extui %9 : i1 to i32
    %c0_i32_6 = arith.constant 0 : i32
    %11 = arith.cmpi ne, %10, %c0_i32_6 : i32
    scf.if %11 {
      %c0_7 = arith.constant 0 : index
      %c0_8 = arith.constant 0 : index
      %12 = vector.load %arg7[%c0_7, %c0_8] : memref<32x1xf32, #tpu.memory_space<vmem>>, vector<32x1xf32>
      %c0_9 = arith.constant 0 : index
      %c0_10 = arith.constant 0 : index
      %13 = vector.load %arg8[%c0_9, %c0_10] : memref<32x1xf32, #tpu.memory_space<vmem>>, vector<32x1xf32>
      %14 = math.log %13 : vector<32x1xf32>
      %15 = arith.addf %12, %14 : vector<32x1xf32>
      %16 = vector.broadcast %15 : vector<32x1xf32> to vector<32x512xf32>
      %17 = arith.subf %5, %16 : vector<32x512xf32>
      %c0_11 = arith.constant 0 : index
      %c0_12 = arith.constant 0 : index
      %18 = vector.load %arg6[%c0_11, %c0_12] : memref<32x512xf32, #tpu.memory_space<vmem>>, vector<32x512xf32>
      tpu.vector_store %arg6[%c0_11, %c0_12], %17 {strides = array<i32>} : memref<32x512xf32, #tpu.memory_space<vmem>>, vector<32x512xf32>,
    } else {
    }
    return
  }
  func.func @transform_0(%arg0: i32, %arg1: i32, %arg2: i32) -> (i32, i32) {
    %c0_i32 = arith.constant 0 : i32
    %c0_i32_0 = arith.constant 0 : i32
    return %arg0, %c0_i32 : i32, i32
  }
  func.func @transform_1(%arg0: i32, %arg1: i32, %arg2: i32) -> (i32, i32) {
    %c0_i32 = arith.constant 0 : i32
    %c0_i32_0 = arith.constant 0 : i32
    return %c0_i32, %arg2 : i32, i32
  }
  func.func @transform_2(%arg0: i32, %arg1: i32, %arg2: i32) -> (i32, i32) {
    %c0_i32 = arith.constant 0 : i32
    %c0_i32_0 = arith.constant 0 : i32
    return %c0_i32, %arg2 : i32, i32
  }
  func.func @transform_3(%arg0: i32, %arg1: i32, %arg2: i32) -> (i32, i32) {
    %0 = arith.muli %arg1, %arg2 : i32
    %c0_i32 = arith.constant 0 : i32
    return %arg0, %0 : i32, i32
  }
}

</mosaic_0001>

<llo_original>
// kernel: masked_language_model.1
$region0: #{masked_language_model.1}
  #allocation0 [shape = 'u32[]', space=smem, size = 0x4, offset = 0x4, fixed_abs, tag = 'smem constant byte address 0x4 - core index']
  #allocation1 [shape = 'u32[144,128]{1,0:T(1,128)}', space=vmem, size = 0x12000, scoped, tag = 'internal scratch']
  #allocation2 [shape = 'f32[32,1]{1,0:T(8,128)}', space=vmem, size = 0x4000, scoped, tag = 'scratch operand']
  #allocation3 [shape = 'f32[32,1]{1,0:T(8,128)}', space=vmem, size = 0x4000, scoped, tag = 'scratch operand']
  %s0 = inlined_call_operand.vmem [shape: bf16[32,32], index: 0, kind: input, shape index: {}]
  %s1 = inlined_call_operand.vmem [shape: bf16[32,1024], index: 1, kind: input, shape index: {}]
  %s2 = inlined_call_operand.vmem [shape: f32[1,1024], index: 2, kind: input, shape index: {}]
  %s3 = inlined_call_operand.vmem [shape: f32[32,1024], index: 3, kind: output, shape index: {}]
  %s4 = sld [smem:[#allocation0]]
  $region99: #{masked_language_model.1} parent=0
    _
  %s6 = ssub.s32 1, %s4
  %s7 = scalar_select 0, %s6, %s4
  $region1: #{masked_language_model.1} parent=0
    #allocation4 [shape = 'u8[65536]{0}', space=vmem, size = 0x10000, scoped, tag = 'input window, operand 1']
    #allocation5 [shape = 'u8[131072]{0}', space=vmem, size = 0x20000, scoped, tag = 'output window, operand 0']
    loop: start=0, step=1, limit=6
    $region2: #{masked_language_model.1} parent=1 // loop_pre_header
      _
    $region3: #{masked_language_model.1} parent=1 // loop_header
      %s9 = sphi 0, %s13
      %p10 = scmp.ge.s32.totalorder %s9, 6
      %s16 = sphi 0, %s35
      %s17 = sphi 0, %s31
      %s18 = sphi 0, %s27
      %s19 = sphi 0, %s16
      %s20 = sphi 0, %s17
      %s21 = sphi 0, %s18
      %s22 = sphi 0, %s19
      %s23 = sphi 0, %s20
      %s24 = sphi 0, %s21
      %s38 = sphi 0, %s40
      %s41 = sphi 0, %s38
      %s42 = sphi 0, %s41
      %s58 = sphi 0, %s42
      %s64 = sphi 0, %s66
      %s67 = sphi 0, %s64
      %s68 = sphi 0, %s67
      %s84 = sphi 0, %s68
      %s90 = sphi 0, %s92
      %s93 = sphi 0, %s90
      %s94 = sphi 0, %s93
      %s110 = sphi 0, %s94
      %s120 = sphi 0, %s122
      %s123 = sphi 0, %s120
      %s124 = sphi 0, %s123
      %s140 = sphi 0, %s124
    $region4: #{masked_language_model.1} parent=1 // loop_header_branch
      %12 = sbr.rel (%p10) target = $region8
    $region5: #{masked_language_model.1} parent=1 // loop_body
      %s14 = ssub.s32 %s9, 1
      %s15 = ssub.s32 %s9, 2
      %s25 = sadd.s32 1, %s18
      %p26 = scmp.ge.s32.totalorder %s25, 2
      %s27 = scalar_select %p26, 0, %s25
      %s28 = sadd.s32 1, %s17
      %s29 = scalar_select %p26, %s28, %s17
      %p30 = scmp.ge.s32.totalorder %s29, 2
      %s31 = scalar_select %p30, 0, %s29
      %s32 = sadd.s32 1, %s16
      %s33 = scalar_select %p30, %s32, %s16
      %p34 = scmp.ge.s32.totalorder %s33, 1
      %s35 = scalar_select %p34, 0, %s33
      %s36 = ssub.s32 %s16, %s35
      %p37 = scmp.eq.s32.totalorder %s36, 0
      %s39 = sadd.s32 %s38, 1
      %s40 = scalar_select %p37, %s38, %s39
      %p43 = pneg %p37
      %p44 = scmp.eq.s32.totalorder %s9, 3
      %p45 = por %p43, %p44
      %p46 = scmp.ne.s32.totalorder %s38, %s41
      %p47 = scmp.eq.s32.totalorder %s9, 0
      %p48 = por %p46, %p47
      %p49 = scmp.ne.s32.totalorder %s38, %s41
      %p50 = scmp.eq.s32.totalorder %s14, 3
      %p51 = por %p49, %p50
      %p52 = scmp.ne.s32.totalorder %s41, %s42
      %p53 = scmp.eq.s32.totalorder %s14, 0
      %p54 = por %p52, %p53
      %p55 = scmp.ne.s32.totalorder %s41, %s42
      %p56 = scmp.eq.s32.totalorder %s15, 3
      %p57 = por %p55, %p56
      %p59 = scmp.ne.s32.totalorder %s42, %s58
      %p60 = scmp.eq.s32.totalorder %s15, 0
      %p61 = por %p59, %p60
      %s62 = ssub.s32 %s18, %s27
      %p63 = scmp.eq.s32.totalorder %s62, 0
      %s65 = sadd.s32 %s64, 1
      %s66 = scalar_select %p63, %s64, %s65
      %p69 = pneg %p63
      %p70 = scmp.eq.s32.totalorder %s9, 3
      %p71 = por %p69, %p70
      %p72 = scmp.ne.s32.totalorder %s64, %s67
      %p73 = scmp.eq.s32.totalorder %s9, 0
      %p74 = por %p72, %p73
      %p75 = scmp.ne.s32.totalorder %s64, %s67
      %p76 = scmp.eq.s32.totalorder %s14, 3
      %p77 = por %p75, %p76
      %p78 = scmp.ne.s32.totalorder %s67, %s68
      %p79 = scmp.eq.s32.totalorder %s14, 0
      %p80 = por %p78, %p79
      %p81 = scmp.ne.s32.totalorder %s67, %s68
      %p82 = scmp.eq.s32.totalorder %s15, 3
      %p83 = por %p81, %p82
      %p85 = scmp.ne.s32.totalorder %s68, %s84
      %p86 = scmp.eq.s32.totalorder %s15, 0
      %p87 = por %p85, %p86
      %s88 = ssub.s32 %s18, %s27
      %p89 = scmp.eq.s32.totalorder %s88, 0
      %s91 = sadd.s32 %s90, 1
      %s92 = scalar_select %p89, %s90, %s91
      %p95 = pneg %p89
      %p96 = scmp.eq.s32.totalorder %s9, 3
      %p97 = por %p95, %p96
      %p98 = scmp.ne.s32.totalorder %s90, %s93
      %p99 = scmp.eq.s32.totalorder %s9, 0
      %p100 = por %p98, %p99
      %p101 = scmp.ne.s32.totalorder %s90, %s93
      %p102 = scmp.eq.s32.totalorder %s14, 3
      %p103 = por %p101, %p102
      %p104 = scmp.ne.s32.totalorder %s93, %s94
      %p105 = scmp.eq.s32.totalorder %s14, 0
      %p106 = por %p104, %p105
      %p107 = scmp.ne.s32.totalorder %s93, %s94
      %p108 = scmp.eq.s32.totalorder %s15, 3
      %p109 = por %p107, %p108
      %p111 = scmp.ne.s32.totalorder %s94, %s110
      %p112 = scmp.eq.s32.totalorder %s15, 0
      %p113 = por %p111, %p112
      %s114 = smul.u32 %s17, %s18
      %s115 = smul.u32 %s31, %s27
      %s116 = ssub.s32 %s16, %s35
      %s117 = ssub.s32 %s114, %s115
      %s118 = sor.u32 %s116, %s117
      %p119 = scmp.eq.s32.totalorder %s118, 0
      %s121 = sadd.s32 %s120, 1
      %s122 = scalar_select %p119, %s120, %s121
      %p125 = pneg %p119
      %p126 = scmp.eq.s32.totalorder %s9, 3
      %p127 = por %p125, %p126
      %p128 = scmp.ne.s32.totalorder %s120, %s123
      %p129 = scmp.eq.s32.totalorder %s9, 0
      %p130 = por %p128, %p129
      %p131 = scmp.ne.s32.totalorder %s120, %s123
      %p132 = scmp.eq.s32.totalorder %s14, 3
      %p133 = por %p131, %p132
      %p134 = scmp.ne.s32.totalorder %s123, %s124
      %p135 = scmp.eq.s32.totalorder %s14, 0
      %p136 = por %p134, %p135
      %p137 = scmp.ne.s32.totalorder %s123, %s124
      %p138 = scmp.eq.s32.totalorder %s15, 3
      %p139 = por %p137, %p138
      %p141 = scmp.ne.s32.totalorder %s124, %s140
      %p142 = scmp.eq.s32.totalorder %s15, 0
      %p143 = por %p141, %p142
      %p144 = scmp.le.s32.totalorder 1, %s9
      %p145 = scmp.lt.s32.totalorder %s9, 5
      %p146 = pnand %p144, %p145
      %p147 = pneg %p146
      // Predicated region
      $region9: #{masked_language_model.1} parent=5 // pred_check
        _
      $region10: #{masked_language_model.1} parent=5 // pred_check_branch
        %149 = sbr.rel (%p146) target = $region12
      $region11: #{masked_language_model.1} parent=5 // pred_region
        %s150 = ssub.s32 %s9, 1
        // Predicated region
        $region13: #{masked_language_model.1} parent=11 // pred_check
          %p151 = pneg %p54
        $region14: #{masked_language_model.1} parent=11 // pred_check_branch
          %153 = sbr.rel (%p151) target = $region16
        $region15: #{masked_language_model.1} parent=11 // pred_region
          %s154 = smul.u32 4, %s19
          %p155 = scmp.lt.s32.totalorder %s154, 3
          %s156 = scalar_select %p155, %s154, 3
          %s157 = smul.addr %s156, 4
          %s158 = scalar_lea.vmem %s0, %s157
          %s159 = smul.u32 4, %s19
        $region16: #{masked_language_model.1} parent=11 // pred_fallthru
          _
      $region12: #{masked_language_model.1} parent=5 // pred_fallthru
        _
      %p160 = scmp.lt.s32.totalorder %s9, 4
      // Predicated region
      $region17: #{masked_language_model.1} parent=5 // pred_check
        %p161 = pneg %p160
      $region18: #{masked_language_model.1} parent=5 // pred_check_branch
        %163 = sbr.rel (%p161) target = $region20
      $region19: #{masked_language_model.1} parent=5 // pred_region
        // Predicated region
        $region21: #{masked_language_model.1} parent=19 // pred_check
          %p164 = pneg %p74
        $region22: #{masked_language_model.1} parent=19 // pred_check_branch
          %166 = sbr.rel (%p164) target = $region24
        $region23: #{masked_language_model.1} parent=19 // pred_region
          %s167 = sand.u32 %s64, 1
          %s168 = sand.u32 %s64, 1
          %s169 = smul.addr %s168, 64
          %s170 = scalar_lea.vmem [#allocation4], %s169
          %s171 = smul.u32 4, %s18
          %s172 = smul.addr %s171, 4
          %s173 = scalar_lea.vmem %s1, %s172
          // Predicated region
          $region25: #{masked_language_model.1} parent=23 // pred_check
            _
          $region26: #{masked_language_model.1} parent=23 // pred_check_branch
            %175 = sbr.rel (0) target = $region28
          $region27: #{masked_language_model.1} parent=23 // pred_region
            // Predicated region
            $region29: #{masked_language_model.1} parent=27 // pred_check
              _
            $region30: #{masked_language_model.1} parent=27 // pred_check_branch
              %177 = sbr.rel (0) target = $region32
            $region31: #{masked_language_model.1} parent=27 // pred_region
              loop: start=0, step=1, limit=1
              $region33: #{masked_language_model.1} parent=31 // loop_pre_header
                _
              $region34: #{masked_language_model.1} parent=31 // loop_header
                %s179 = sphi 0, %s183
                %p180 = scmp.ge.s32.totalorder %s179, 1
                %s184 = sphi %s173, %s173
                %s185 = sphi %s170, %s170
              $region35: #{masked_language_model.1} parent=31 // loop_header_branch
                %182 = sbr.rel (%p180) target = $region39
              $region36: #{masked_language_model.1} parent=31 // loop_body
                %v186 = vld [vmem:[%s184] sm:$0xff]
                %187 = vst [vmem:[%s185] sm:$0xff] %v186
                %v188 = vld [vmem:[%s184 + $0x8] sm:$0xff]
                %189 = vst [vmem:[%s185 + $0x8] sm:$0xff] %v188
                %v190 = vld [vmem:[%s184 + $0x20] sm:$0xff]
                %191 = vst [vmem:[%s185 + $0x10] sm:$0xff] %v190
                %v192 = vld [vmem:[%s184 + $0x28] sm:$0xff]
                %193 = vst [vmem:[%s185 + $0x18] sm:$0xff] %v192
                %v194 = vld [vmem:[%s184 + $0x40] sm:$0xff]
                %195 = vst [vmem:[%s185 + $0x20] sm:$0xff] %v194
                %v196 = vld [vmem:[%s184 + $0x48] sm:$0xff]
                %197 = vst [vmem:[%s185 + $0x28] sm:$0xff] %v196
                %v198 = vld [vmem:[%s184 + $0x60] sm:$0xff]
                %199 = vst [vmem:[%s185 + $0x30] sm:$0xff] %v198
                %v200 = vld [vmem:[%s184 + $0x68] sm:$0xff]
                %201 = vst [vmem:[%s185 + $0x38] sm:$0xff] %v200
              $region37: #{masked_language_model.1} parent=31 // loop_footer
                %s183 = sadd.s32 1, %s179
              $region38: #{masked_language_model.1} parent=31 // loop_footer_branch
                %178 = sbr.rel target = $region34
              $region39: #{masked_language_model.1} parent=31 // loop_exit
                _
            $region32: #{masked_language_model.1} parent=27 // pred_fallthru
              _
            // Predicated region
            $region40: #{masked_language_model.1} parent=27 // pred_check
              _
            $region41: #{masked_language_model.1} parent=27 // pred_check_branch
              %203 = sbr.rel target = $region43
            $region42: #{masked_language_model.1} parent=27 // pred_region
              _
            $region43: #{masked_language_model.1} parent=27 // pred_fallthru
              _
          $region28: #{masked_language_model.1} parent=23 // pred_fallthru
            _
          %204 = vnop
        $region24: #{masked_language_model.1} parent=19 // pred_fallthru
          _
        // Predicated region
        $region44: #{masked_language_model.1} parent=19 // pred_check
          %p205 = pneg %p100
        $region45: #{masked_language_model.1} parent=19 // pred_check_branch
          %207 = sbr.rel (%p205) target = $region47
        $region46: #{masked_language_model.1} parent=19 // pred_region
          %s208 = smul.u32 4, %s18
          %p209 = scmp.lt.s32.totalorder %s208, 7
          %s210 = scalar_select %p209, %s208, 7
          %s211 = scalar_lea.vmem %s2, %s210
          %s212 = smul.u32 4, %s18
        $region47: #{masked_language_model.1} parent=19 // pred_fallthru
          _
      $region20: #{masked_language_model.1} parent=5 // pred_fallthru
        _
      %p213 = scmp.le.s32.totalorder 1, %s9
      %p214 = scmp.lt.s32.totalorder %s9, 5
      %p215 = pnand %p213, %p214
      %p216 = pneg %p215
      // Predicated region
      $region48: #{masked_language_model.1} parent=5 // pred_check
        _
      $region49: #{masked_language_model.1} parent=5 // pred_check_branch
        %218 = sbr.rel (%p215) target = $region51
      $region50: #{masked_language_model.1} parent=5 // pred_region
        %s219 = ssub.s32 %s9, 1
        %s220 = sand.u32 %s67, 1
        %s221 = sand.u32 %s67, 1
        %s222 = smul.addr %s221, 64
        %s223 = scalar_lea.vmem [#allocation4], %s222
        // Predicated region
        $region52: #{masked_language_model.1} parent=50 // pred_check
          %p224 = pneg %p80
        $region53: #{masked_language_model.1} parent=50 // pred_check_branch
          %226 = sbr.rel (%p224) target = $region55
        $region54: #{masked_language_model.1} parent=50 // pred_region
          _
        $region55: #{masked_language_model.1} parent=50 // pred_fallthru
          _
        %s227 = smul.u32 4, %s19
        %p228 = scmp.lt.s32.totalorder %s227, 3
        %s229 = scalar_select %p228, %s227, 3
        %s230 = smul.addr %s229, 4
        %s231 = scalar_lea.vmem %s0, %s230
        %p232 = pneg %p54
        %p233 = pneg %p51
        %s234 = sand.u32 %s67, 1
        %s235 = sand.u32 %s67, 1
        %s236 = smul.addr %s235, 64
        %s237 = scalar_lea.vmem [#allocation4], %s236
        %p238 = pneg %p80
        %p239 = pneg %p77
        %s240 = smul.u32 4, %s21
        %p241 = scmp.lt.s32.totalorder %s240, 7
        %s242 = scalar_select %p241, %s240, 7
        %s243 = scalar_lea.vmem %s2, %s242
        %p244 = pneg %p106
        %p245 = pneg %p103
        %p246 = pneg %p136
        %p247 = pneg %p133
        %s248 = sand.u32 %s123, 1
        %s249 = sand.u32 %s123, 1
        %s250 = smul.addr %s249, 128
        %s251 = scalar_lea.vmem [#allocation5], %s250
        %s252 = smul.u32 4, %s19
        %p253 = scmp.lt.s32.totalorder %s252, 3
        %s254 = scalar_select %p253, %s252, 3
        %s255 = smul.addr %s254, 4
        %s256 = scalar_lea.vmem %s0, %s255
        %s257 = smul.u32 4, %s19
        %s258 = smul.u32 4, %s21
        %s259 = smul.u32 4, %s21
        %p260 = scmp.lt.s32.totalorder %s259, 7
        %s261 = scalar_select %p260, %s259, 7
        %s262 = scalar_lea.vmem %s2, %s261
        %s263 = smul.u32 4, %s21
        %s264 = smul.u32 %s20, %s21
        %s265 = smul.u32 4, %s19
        %s266 = smul.u32 4, %s264
        %v268 = vld [vmem:[%s256] sm:$0xf]
        %v269 = vld [vmem:[%s256 + $0x4] sm:$0xf]
        %v270 = vld [vmem:[%s256 + $0x8] sm:$0xf]
        %v271 = vld [vmem:[%s256 + $0xc] sm:$0xf]
        %v272 = vld [vmem:[%s223] sm:$0xff]
        %v273 = vld [vmem:[%s223 + $0x8] sm:$0xff]
        %v274 = vld [vmem:[%s223 + $0x10] sm:$0xff]
        %v275 = vld [vmem:[%s223 + $0x18] sm:$0xff]
        %v276 = vld [vmem:[%s223 + $0x20] sm:$0xff]
        %v277 = vld [vmem:[%s223 + $0x28] sm:$0xff]
        %v278 = vld [vmem:[%s223 + $0x30] sm:$0xff]
        %v279 = vld [vmem:[%s223 + $0x38] sm:$0xff]
        %v280 = vld [vmem:[%s262] sm:$0xf]
        %v282 = vlaneseq
        %v283 = vshrl.u32 %v282, 7
        %v284 = vsub.s32 0, %v283
        %v285 = vrot.slane %v280, %v284
        %v286 = vlaneseq
        %v287 = vshrl.u32 %v286, 7
        %v288 = vsub.s32 1, %v287
        %v289 = vrot.slane %v280, %v288
        %v290 = vlaneseq
        %v291 = vshrl.u32 %v290, 7
        %v292 = vsub.s32 2, %v291
        %v293 = vrot.slane %v280, %v292
        %v294 = vlaneseq
        %v295 = vshrl.u32 %v294, 7
        %v296 = vsub.s32 3, %v295
        %v297 = vrot.slane %v280, %v296
        %v306 = vunpack.c.l.b16 %v268
        %v307 = vunpack.c.l.b16 %v269
        %v308 = vunpack.c.l.b16 %v270
        %v309 = vunpack.c.l.b16 %v271
        %v310 = vpack.c.b16 %v307, %v306
        %v311 = vpack.c.b16 %v309, %v308
        %v320 = vunpack.c.l.b16 %v272
        %v321 = vunpack.c.h.b16 %v272
        %v322 = vunpack.c.l.b16 %v273
        %v323 = vunpack.c.h.b16 %v273
        %v324 = vunpack.c.l.b16 %v274
        %v325 = vunpack.c.h.b16 %v274
        %v326 = vunpack.c.l.b16 %v275
        %v327 = vunpack.c.h.b16 %v275
        %v328 = vunpack.c.l.b16 %v276
        %v329 = vunpack.c.h.b16 %v276
        %v330 = vunpack.c.l.b16 %v277
        %v331 = vunpack.c.h.b16 %v277
        %v332 = vunpack.c.l.b16 %v278
        %v333 = vunpack.c.h.b16 %v278
        %v334 = vunpack.c.l.b16 %v279
        %v335 = vunpack.c.h.b16 %v279
        %v336 = vpack.c.b16 %v324, %v320
        %v337 = vpack.c.b16 %v325, %v321
        %v338 = vpack.c.b16 %v326, %v322
        %v339 = vpack.c.b16 %v327, %v323
        %v340 = vpack.c.b16 %v332, %v328
        %v341 = vpack.c.b16 %v333, %v329
        %v342 = vpack.c.b16 %v334, %v330
        %v343 = vpack.c.b16 %v335, %v331
        %vm352 = vcmask 261120
        %v354 = vsel %vm352, %v310, 0
        %v357 = vsel %vm352, %v311, 0
        %359 = vmatprep.subr.bf16.mxu0 %v337
        %360 = vmatpush1.bf16.msra.mxu0 %v336
        %361 = vmatprep.subr.bf16.mxu0 %v341
        %362 = vmatpush1.bf16.msra.mxu0 %v340
        %363 = vmatprep.subr.bf16.mxu0 0
        %364 = vmatpush1.bf16.msra.mxu0 0
        %365 = vmatprep.subr.bf16.mxu0 0
        %366 = vmatpush1.bf16.msra.mxu0 0
        %367 = vmatprep.subr.bf16.mxu0 0
        %368 = vmatpush1.bf16.msra.mxu0 0
        %369 = vmatprep.subr.bf16.mxu0 0
        %370 = vmatpush1.bf16.msra.mxu0 0
        %371 = vmatprep.subr.bf16.mxu0 0
        %372 = vmatpush1.bf16.msra.mxu0 0
        %373 = vmatprep.subr.bf16.mxu0 0
        %374 = vmatpush1.bf16.msra.mxu0 0
        %375 = vmatprep.subr.bf16.mxu0 0
        %376 = vmatpush1.bf16.msra.mxu0 0
        %377 = vmatprep.subr.bf16.mxu0 0
        %378 = vmatpush1.bf16.msra.mxu0 0
        %379 = vmatprep.subr.bf16.mxu0 0
        %380 = vmatpush1.bf16.msra.mxu0 0
        %381 = vmatprep.subr.bf16.mxu0 0
        %382 = vmatpush1.bf16.msra.mxu0 0
        %383 = vmatprep.subr.bf16.mxu0 0
        %384 = vmatpush1.bf16.msra.mxu0 0
        %385 = vmatprep.subr.bf16.mxu0 0
        %386 = vmatpush1.bf16.msra.mxu0 0
        %387 = vmatprep.subr.bf16.mxu0 0
        %388 = vmatpush1.bf16.msra.mxu0 0
        %389 = vmatprep.subr.bf16.mxu0 0
        %390 = vmatpush1.bf16.msra.mxu0 0
        %391 = vmatprep.mubr.bf16.mxu0 0
        %392 = vmatmul.mubr.bf16.gmra.mrb[0].mxu0 %v354
        %v393 = vpop.f32.mrb[0].mxu0
        %v394 = vadd.f32 %v285, %v393
        %v395 = vpop.f32.mrb[0].mxu0
        %v396 = vadd.f32 %v289, %v395
        %v397 = vpop.f32.mrb[0].mxu0
        %v398 = vadd.f32 %v285, %v397
        %v399 = vpop.f32.mrb[0].mxu0
        %v400 = vadd.f32 %v289, %v399
        %401 = vmatprep.mubr.bf16.mxu0 0
        %402 = vmatmul.mubr.bf16.gmra.mrb[0].mxu0 %v357
        %v403 = vpop.f32.mrb[0].mxu0
        %v404 = vadd.f32 %v285, %v403
        %v405 = vpop.f32.mrb[0].mxu0
        %v406 = vadd.f32 %v289, %v405
        %v407 = vpop.f32.mrb[0].mxu0
        %v408 = vadd.f32 %v285, %v407
        %v409 = vpop.f32.mrb[0].mxu0
        %v410 = vadd.f32 %v289, %v409
        %411 = vdwg.mxu0
        %412 = vmatprep.subr.bf16.mxu0 %v339
        %413 = vmatpush1.bf16.msra.mxu0 %v338
        %414 = vmatprep.subr.bf16.mxu0 %v343
        %415 = vmatpush1.bf16.msra.mxu0 %v342
        %416 = vmatprep.subr.bf16.mxu0 0
        %417 = vmatpush1.bf16.msra.mxu0 0
        %418 = vmatprep.subr.bf16.mxu0 0
        %419 = vmatpush1.bf16.msra.mxu0 0
        %420 = vmatprep.subr.bf16.mxu0 0
        %421 = vmatpush1.bf16.msra.mxu0 0
        %422 = vmatprep.subr.bf16.mxu0 0
        %423 = vmatpush1.bf16.msra.mxu0 0
        %424 = vmatprep.subr.bf16.mxu0 0
        %425 = vmatpush1.bf16.msra.mxu0 0
        %426 = vmatprep.subr.bf16.mxu0 0
        %427 = vmatpush1.bf16.msra.mxu0 0
        %428 = vmatprep.subr.bf16.mxu0 0
        %429 = vmatpush1.bf16.msra.mxu0 0
        %430 = vmatprep.subr.bf16.mxu0 0
        %431 = vmatpush1.bf16.msra.mxu0 0
        %432 = vmatprep.subr.bf16.mxu0 0
        %433 = vmatpush1.bf16.msra.mxu0 0
        %434 = vmatprep.subr.bf16.mxu0 0
        %435 = vmatpush1.bf16.msra.mxu0 0
        %436 = vmatprep.subr.bf16.mxu0 0
        %437 = vmatpush1.bf16.msra.mxu0 0
        %438 = vmatprep.subr.bf16.mxu0 0
        %439 = vmatpush1.bf16.msra.mxu0 0
        %440 = vmatprep.subr.bf16.mxu0 0
        %441 = vmatpush1.bf16.msra.mxu0 0
        %442 = vmatprep.subr.bf16.mxu0 0
        %443 = vmatpush1.bf16.msra.mxu0 0
        %444 = vmatprep.mubr.bf16.mxu0 0
        %445 = vmatmul.mubr.bf16.gmra.mrb[0].mxu0 %v354
        %v446 = vpop.f32.mrb[0].mxu0
        %v447 = vadd.f32 %v293, %v446
        %v448 = vpop.f32.mrb[0].mxu0
        %v449 = vadd.f32 %v297, %v448
        %v450 = vpop.f32.mrb[0].mxu0
        %v451 = vadd.f32 %v293, %v450
        %v452 = vpop.f32.mrb[0].mxu0
        %v453 = vadd.f32 %v297, %v452
        %454 = vmatprep.mubr.bf16.mxu0 0
        %455 = vmatmul.mubr.bf16.gmra.mrb[0].mxu0 %v357
        %v456 = vpop.f32.mrb[0].mxu0
        %v457 = vadd.f32 %v293, %v456
        %v458 = vpop.f32.mrb[0].mxu0
        %v459 = vadd.f32 %v297, %v458
        %v460 = vpop.f32.mrb[0].mxu0
        %v461 = vadd.f32 %v293, %v460
        %v462 = vpop.f32.mrb[0].mxu0
        %v463 = vadd.f32 %v297, %v462
        %464 = vdwg.mxu0
        %p465 = scmp.eq.s32.totalorder %s20, 0
        // Predicated region
        $region56: #{masked_language_model.1} parent=50 // pred_check
          %p466 = pneg %p465
        $region57: #{masked_language_model.1} parent=50 // pred_check_branch
          %468 = sbr.rel (%p466) target = $region59
        $region58: #{masked_language_model.1} parent=50 // pred_region
          %p469 = scmp.eq.s32.totalorder %s21, 0
          // Predicated region
          $region60: #{masked_language_model.1} parent=58 // pred_check
            %p470 = pneg %p469
          $region61: #{masked_language_model.1} parent=58 // pred_check_branch
            %472 = sbr.rel (%p470) target = $region63
          $region62: #{masked_language_model.1} parent=58 // pred_region
            %vm473 = vcmask 7168
            %474 = vst.msk [vmem:[#allocation2] sm:$0xff] %vm473, -1e+30
            %475 = vst.msk [vmem:[#allocation2 + $0x8] sm:$0xff] %vm473, -1e+30
            %476 = vst.msk [vmem:[#allocation2 + $0x10] sm:$0xff] %vm473, -1e+30
            %477 = vst.msk [vmem:[#allocation2 + $0x18] sm:$0xff] %vm473, -1e+30
            %478 = vst.msk [vmem:[#allocation3] sm:$0xff] %vm473, 0.0
            %479 = vst.msk [vmem:[#allocation3 + $0x8] sm:$0xff] %vm473, 0.0
            %480 = vst.msk [vmem:[#allocation3 + $0x10] sm:$0xff] %vm473, 0.0
            %481 = vst.msk [vmem:[#allocation3 + $0x18] sm:$0xff] %vm473, 0.0
          $region63: #{masked_language_model.1} parent=58 // pred_fallthru
            _
          %v482 = vld [vmem:[#allocation2] sm:$0xff]
          %v483 = vld [vmem:[#allocation2 + $0x8] sm:$0xff]
          %v484 = vld [vmem:[#allocation2 + $0x10] sm:$0xff]
          %v485 = vld [vmem:[#allocation2 + $0x18] sm:$0xff]
          %v486 = vmax.f32 %v394, %v396
          %v487 = vmax.f32 %v486, %v447
          %v488 = vmax.f32 %v487, %v449
          %489 = vmax.xlane.f32.xlu0 %v488
          %v490 = vpop.xlane.xlu0 %489
          %v491 = vmax.f32 %v398, %v400
          %v492 = vmax.f32 %v491, %v451
          %v493 = vmax.f32 %v492, %v453
          %494 = vmax.xlane.f32.xlu0 %v493
          %v495 = vpop.xlane.xlu0 %494
          %v496 = vmax.f32 %v404, %v406
          %v497 = vmax.f32 %v496, %v457
          %v498 = vmax.f32 %v497, %v459
          %499 = vmax.xlane.f32.xlu0 %v498
          %v500 = vpop.xlane.xlu0 %499
          %v501 = vmax.f32 %v408, %v410
          %v502 = vmax.f32 %v501, %v461
          %v503 = vmax.f32 %v502, %v463
          %504 = vmax.xlane.f32.xlu0 %v503
          %v505 = vpop.xlane.xlu0 %504
          %v506 = vmax.f32 %v482, %v490
          %v507 = vmax.f32 %v483, %v495
          %v508 = vmax.f32 %v484, %v500
          %v509 = vmax.f32 %v485, %v505
          %v510 = vld [vmem:[#allocation3] sm:$0xff]
          %v511 = vld [vmem:[#allocation3 + $0x8] sm:$0xff]
          %v512 = vld [vmem:[#allocation3 + $0x10] sm:$0xff]
          %v513 = vld [vmem:[#allocation3 + $0x18] sm:$0xff]
          %v514 = vsub.f32 %v482, %v506
          %v515 = vsub.f32 %v483, %v507
          %v516 = vsub.f32 %v484, %v508
          %v517 = vsub.f32 %v485, %v509
          %v518 = vmul.f32 %v514, 1.442695
          %v519 = vpow.pop %v518
          %v520 = vmul.f32 %v515, 1.442695
          %v521 = vpow.pop %v520
          %v522 = vmul.f32 %v516, 1.442695
          %v523 = vpow.pop %v522
          %v524 = vmul.f32 %v517, 1.442695
          %v525 = vpow.pop %v524
          %v526 = vmul.f32 %v510, %v519
          %v527 = vmul.f32 %v511, %v521
          %v528 = vmul.f32 %v512, %v523
          %v529 = vmul.f32 %v513, %v525
          %531 = vset.pattern.permute.xlu0 0
          %532 = vperm.xlu0 %531, %v506
          %v533 = vpop.permute.xlu0 %532
          %536 = vset.pattern.permute.xlu0 0
          %537 = vperm.xlu0 %536, %v507
          %v538 = vpop.permute.xlu0 %537
          %541 = vset.pattern.permute.xlu0 0
          %542 = vperm.xlu0 %541, %v508
          %v543 = vpop.permute.xlu0 %542
          %546 = vset.pattern.permute.xlu0 0
          %547 = vperm.xlu0 %546, %v509
          %v548 = vpop.permute.xlu0 %547
          %v550 = vsub.f32 %v394, %v533
          %v551 = vsub.f32 %v396, %v533
          %v552 = vsub.f32 %v447, %v533
          %v553 = vsub.f32 %v449, %v533
          %v554 = vsub.f32 %v398, %v538
          %v555 = vsub.f32 %v400, %v538
          %v556 = vsub.f32 %v451, %v538
          %v557 = vsub.f32 %v453, %v538
          %v558 = vsub.f32 %v404, %v543
          %v559 = vsub.f32 %v406, %v543
          %v560 = vsub.f32 %v457, %v543
          %v561 = vsub.f32 %v459, %v543
          %v562 = vsub.f32 %v408, %v548
          %v563 = vsub.f32 %v410, %v548
          %v564 = vsub.f32 %v461, %v548
          %v565 = vsub.f32 %v463, %v548
          %v566 = vmul.f32 %v550, 1.442695
          %v567 = vpow.pop %v566
          %v568 = vmul.f32 %v551, 1.442695
          %v569 = vpow.pop %v568
          %v570 = vmul.f32 %v552, 1.442695
          %v571 = vpow.pop %v570
          %v572 = vmul.f32 %v553, 1.442695
          %v573 = vpow.pop %v572
          %v574 = vmul.f32 %v554, 1.442695
          %v575 = vpow.pop %v574
          %v576 = vmul.f32 %v555, 1.442695
          %v577 = vpow.pop %v576
          %v578 = vmul.f32 %v556, 1.442695
          %v579 = vpow.pop %v578
          %v580 = vmul.f32 %v557, 1.442695
          %v581 = vpow.pop %v580
          %v582 = vmul.f32 %v558, 1.442695
          %v583 = vpow.pop %v582
          %v584 = vmul.f32 %v559, 1.442695
          %v585 = vpow.pop %v584
          %v586 = vmul.f32 %v560, 1.442695
          %v587 = vpow.pop %v586
          %v588 = vmul.f32 %v561, 1.442695
          %v589 = vpow.pop %v588
          %v590 = vmul.f32 %v562, 1.442695
          %v591 = vpow.pop %v590
          %v592 = vmul.f32 %v563, 1.442695
          %v593 = vpow.pop %v592
          %v594 = vmul.f32 %v564, 1.442695
          %v595 = vpow.pop %v594
          %v596 = vmul.f32 %v565, 1.442695
          %v597 = vpow.pop %v596
          %v598 = vadd.f32 %v567, %v569
          %v599 = vadd.f32 %v598, %v571
          %v600 = vadd.f32 %v599, %v573
          %601 = vadd.xlane.f32.xlu0 %v600
          %v602 = vpop.xlane.xlu0 %601
          %v603 = vadd.f32 %v575, %v577
          %v604 = vadd.f32 %v603, %v579
          %v605 = vadd.f32 %v604, %v581
          %606 = vadd.xlane.f32.xlu0 %v605
          %v607 = vpop.xlane.xlu0 %606
          %v608 = vadd.f32 %v583, %v585
          %v609 = vadd.f32 %v608, %v587
          %v610 = vadd.f32 %v609, %v589
          %611 = vadd.xlane.f32.xlu0 %v610
          %v612 = vpop.xlane.xlu0 %611
          %v613 = vadd.f32 %v591, %v593
          %v614 = vadd.f32 %v613, %v595
          %v615 = vadd.f32 %v614, %v597
          %616 = vadd.xlane.f32.xlu0 %v615
          %v617 = vpop.xlane.xlu0 %616
          %v618 = vadd.f32 %v526, %v602
          %v619 = vadd.f32 %v527, %v607
          %v620 = vadd.f32 %v528, %v612
          %v621 = vadd.f32 %v529, %v617
          %vm622 = vcmask 7168
          %623 = vst.msk [vmem:[#allocation3] sm:$0xff] %vm622, %v618
          %624 = vst.msk [vmem:[#allocation3 + $0x8] sm:$0xff] %vm622, %v619
          %625 = vst.msk [vmem:[#allocation3 + $0x10] sm:$0xff] %vm622, %v620
          %626 = vst.msk [vmem:[#allocation3 + $0x18] sm:$0xff] %vm622, %v621
          %627 = vst.msk [vmem:[#allocation2] sm:$0xff] %vm622, %v506
          %628 = vst.msk [vmem:[#allocation2 + $0x8] sm:$0xff] %vm622, %v507
          %629 = vst.msk [vmem:[#allocation2 + $0x10] sm:$0xff] %vm622, %v508
          %630 = vst.msk [vmem:[#allocation2 + $0x18] sm:$0xff] %vm622, %v509
        $region59: #{masked_language_model.1} parent=50 // pred_fallthru
          _
        %p631 = scmp.eq.s32.totalorder %s20, 1
        // Predicated region
        $region64: #{masked_language_model.1} parent=50 // pred_check
          %p632 = pneg %p631
        $region65: #{masked_language_model.1} parent=50 // pred_check_branch
          %634 = sbr.rel (%p632) target = $region67
        $region66: #{masked_language_model.1} parent=50 // pred_region
          %v635 = vld [vmem:[#allocation2] sm:$0xff]
          %v636 = vld [vmem:[#allocation2 + $0x8] sm:$0xff]
          %v637 = vld [vmem:[#allocation2 + $0x10] sm:$0xff]
          %v638 = vld [vmem:[#allocation2 + $0x18] sm:$0xff]
          %v639 = vld [vmem:[#allocation3] sm:$0xff]
          %v640 = vld [vmem:[#allocation3 + $0x8] sm:$0xff]
          %v641 = vld [vmem:[#allocation3 + $0x10] sm:$0xff]
          %v642 = vld [vmem:[#allocation3 + $0x18] sm:$0xff]
          %v643 = vlog2.pop %v639
          %v644 = vmul.f32 %v643, 0.6931472
          %v645 = vlog2.pop %v640
          %v646 = vmul.f32 %v645, 0.6931472
          %v647 = vlog2.pop %v641
          %v648 = vmul.f32 %v647, 0.6931472
          %v649 = vlog2.pop %v642
          %v650 = vmul.f32 %v649, 0.6931472
          %v651 = vadd.f32 %v635, %v644
          %v652 = vadd.f32 %v636, %v646
          %v653 = vadd.f32 %v637, %v648
          %v654 = vadd.f32 %v638, %v650
          %656 = vset.pattern.permute.xlu0 0
          %657 = vperm.xlu0 %656, %v651
          %v658 = vpop.permute.xlu0 %657
          %661 = vset.pattern.permute.xlu0 0
          %662 = vperm.xlu0 %661, %v652
          %v663 = vpop.permute.xlu0 %662
          %666 = vset.pattern.permute.xlu0 0
          %667 = vperm.xlu0 %666, %v653
          %v668 = vpop.permute.xlu0 %667
          %671 = vset.pattern.permute.xlu0 0
          %672 = vperm.xlu0 %671, %v654
          %v673 = vpop.permute.xlu0 %672
          %v675 = vsub.f32 %v394, %v658
          %v676 = vsub.f32 %v396, %v658
          %v677 = vsub.f32 %v447, %v658
          %v678 = vsub.f32 %v449, %v658
          %v679 = vsub.f32 %v398, %v663
          %v680 = vsub.f32 %v400, %v663
          %v681 = vsub.f32 %v451, %v663
          %v682 = vsub.f32 %v453, %v663
          %v683 = vsub.f32 %v404, %v668
          %v684 = vsub.f32 %v406, %v668
          %v685 = vsub.f32 %v457, %v668
          %v686 = vsub.f32 %v459, %v668
          %v687 = vsub.f32 %v408, %v673
          %v688 = vsub.f32 %v410, %v673
          %v689 = vsub.f32 %v461, %v673
          %v690 = vsub.f32 %v463, %v673
          %691 = vst [vmem:[%s251] sm:$0xff] %v675
          %692 = vst [vmem:[%s251 + $0x8] sm:$0xff] %v676
          %693 = vst [vmem:[%s251 + $0x10] sm:$0xff] %v677
          %694 = vst [vmem:[%s251 + $0x18] sm:$0xff] %v678
          %695 = vst [vmem:[%s251 + $0x20] sm:$0xff] %v679
          %696 = vst [vmem:[%s251 + $0x28] sm:$0xff] %v680
          %697 = vst [vmem:[%s251 + $0x30] sm:$0xff] %v681
          %698 = vst [vmem:[%s251 + $0x38] sm:$0xff] %v682
          %699 = vst [vmem:[%s251 + $0x40] sm:$0xff] %v683
          %700 = vst [vmem:[%s251 + $0x48] sm:$0xff] %v684
          %701 = vst [vmem:[%s251 + $0x50] sm:$0xff] %v685
          %702 = vst [vmem:[%s251 + $0x58] sm:$0xff] %v686
          %703 = vst [vmem:[%s251 + $0x60] sm:$0xff] %v687
          %704 = vst [vmem:[%s251 + $0x68] sm:$0xff] %v688
          %705 = vst [vmem:[%s251 + $0x70] sm:$0xff] %v689
          %706 = vst [vmem:[%s251 + $0x78] sm:$0xff] %v690
        $region67: #{masked_language_model.1} parent=50 // pred_fallthru
          _
        %s707 = sand.u32 %s123, 1
        %s708 = sand.u32 %s123, 1
        %s709 = smul.addr %s708, 128
        %s710 = scalar_lea.vmem [#allocation5], %s709
        // Predicated region
        $region68: #{masked_language_model.1} parent=50 // pred_check
          %p711 = pneg %p133
        $region69: #{masked_language_model.1} parent=50 // pred_check_branch
          %713 = sbr.rel (%p711) target = $region71
        $region70: #{masked_language_model.1} parent=50 // pred_region
          %s714 = smul.u32 %s20, %s21
          %s715 = smul.u32 4, %s19
          %s716 = smul.u32 4, %s714
          %s717 = smul.addr %s715, 8
          %s718 = sadd.s32 %s716, %s717
          %s719 = smul.addr %s718, 8
          %s720 = scalar_lea.vmem %s3, %s719
          // Predicated region
          $region72: #{masked_language_model.1} parent=70 // pred_check
            _
          $region73: #{masked_language_model.1} parent=70 // pred_check_branch
            %722 = sbr.rel (0) target = $region75
          $region74: #{masked_language_model.1} parent=70 // pred_region
            // Predicated region
            $region76: #{masked_language_model.1} parent=74 // pred_check
              _
            $region77: #{masked_language_model.1} parent=74 // pred_check_branch
              %724 = sbr.rel (0) target = $region79
            $region78: #{masked_language_model.1} parent=74 // pred_region
              loop: start=0, step=1, limit=1
              $region80: #{masked_language_model.1} parent=78 // loop_pre_header
                _
              $region81: #{masked_language_model.1} parent=78 // loop_header
                %s726 = sphi 0, %s730
                %p727 = scmp.ge.s32.totalorder %s726, 1
                %s731 = sphi %s710, %s710
                %s732 = sphi %s720, %s720
              $region82: #{masked_language_model.1} parent=78 // loop_header_branch
                %729 = sbr.rel (%p727) target = $region86
              $region83: #{masked_language_model.1} parent=78 // loop_body
                %v733 = vld [vmem:[%s731] sm:$0xff]
                %734 = vst [vmem:[%s732] sm:$0xff] %v733
                %v735 = vld [vmem:[%s731 + $0x8] sm:$0xff]
                %736 = vst [vmem:[%s732 + $0x8] sm:$0xff] %v735
                %v737 = vld [vmem:[%s731 + $0x10] sm:$0xff]
                %738 = vst [vmem:[%s732 + $0x10] sm:$0xff] %v737
                %v739 = vld [vmem:[%s731 + $0x18] sm:$0xff]
                %740 = vst [vmem:[%s732 + $0x18] sm:$0xff] %v739
                %v741 = vld [vmem:[%s731 + $0x20] sm:$0xff]
                %742 = vst [vmem:[%s732 + $0x40] sm:$0xff] %v741
                %v743 = vld [vmem:[%s731 + $0x28] sm:$0xff]
                %744 = vst [vmem:[%s732 + $0x48] sm:$0xff] %v743
                %v745 = vld [vmem:[%s731 + $0x30] sm:$0xff]
                %746 = vst [vmem:[%s732 + $0x50] sm:$0xff] %v745
                %v747 = vld [vmem:[%s731 + $0x38] sm:$0xff]
                %748 = vst [vmem:[%s732 + $0x58] sm:$0xff] %v747
                %v749 = vld [vmem:[%s731 + $0x40] sm:$0xff]
                %750 = vst [vmem:[%s732 + $0x80] sm:$0xff] %v749
                %v751 = vld [vmem:[%s731 + $0x48] sm:$0xff]
                %752 = vst [vmem:[%s732 + $0x88] sm:$0xff] %v751
                %v753 = vld [vmem:[%s731 + $0x50] sm:$0xff]
                %754 = vst [vmem:[%s732 + $0x90] sm:$0xff] %v753
                %v755 = vld [vmem:[%s731 + $0x58] sm:$0xff]
                %756 = vst [vmem:[%s732 + $0x98] sm:$0xff] %v755
                %v757 = vld [vmem:[%s731 + $0x60] sm:$0xff]
                %758 = vst [vmem:[%s732 + $0xc0] sm:$0xff] %v757
                %v759 = vld [vmem:[%s731 + $0x68] sm:$0xff]
                %760 = vst [vmem:[%s732 + $0xc8] sm:$0xff] %v759
                %v761 = vld [vmem:[%s731 + $0x70] sm:$0xff]
                %762 = vst [vmem:[%s732 + $0xd0] sm:$0xff] %v761
                %v763 = vld [vmem:[%s731 + $0x78] sm:$0xff]
                %764 = vst [vmem:[%s732 + $0xd8] sm:$0xff] %v763
              $region84: #{masked_language_model.1} parent=78 // loop_footer
                %s730 = sadd.s32 1, %s726
              $region85: #{masked_language_model.1} parent=78 // loop_footer_branch
                %725 = sbr.rel target = $region81
              $region86: #{masked_language_model.1} parent=78 // loop_exit
                _
            $region79: #{masked_language_model.1} parent=74 // pred_fallthru
              _
            // Predicated region
            $region87: #{masked_language_model.1} parent=74 // pred_check
              _
            $region88: #{masked_language_model.1} parent=74 // pred_check_branch
              %766 = sbr.rel target = $region90
            $region89: #{masked_language_model.1} parent=74 // pred_region
              _
            $region90: #{masked_language_model.1} parent=74 // pred_fallthru
              _
          $region75: #{masked_language_model.1} parent=70 // pred_fallthru
            _
          %767 = vnop
        $region71: #{masked_language_model.1} parent=50 // pred_fallthru
          _
      $region51: #{masked_language_model.1} parent=5 // pred_fallthru
        _
      %p768 = scmp.le.s32.totalorder 2, %s9
      // Predicated region
      $region91: #{masked_language_model.1} parent=5 // pred_check
        %p769 = pneg %p768
      $region92: #{masked_language_model.1} parent=5 // pred_check_branch
        %771 = sbr.rel (%p769) target = $region94
      $region93: #{masked_language_model.1} parent=5 // pred_region
        %s772 = ssub.s32 %s9, 2
        // Predicated region
        $region95: #{masked_language_model.1} parent=93 // pred_check
          %p773 = pneg %p139
        $region96: #{masked_language_model.1} parent=93 // pred_check_branch
          %775 = sbr.rel (%p773) target = $region98
        $region97: #{masked_language_model.1} parent=93 // pred_region
          %s776 = sand.u32 %s124, 1
          %s777 = sand.u32 %s124, 1
          %s778 = smul.addr %s777, 128
          %s779 = scalar_lea.vmem [#allocation5], %s778
        $region98: #{masked_language_model.1} parent=93 // pred_fallthru
          _
      $region94: #{masked_language_model.1} parent=5 // pred_fallthru
        _
    $region6: #{masked_language_model.1} parent=1 // loop_footer
      %s13 = sadd.s32 1, %s9
    $region7: #{masked_language_model.1} parent=1 // loop_footer_branch
      %8 = sbr.rel target = $region3
    $region8: #{masked_language_model.1} parent=1 // loop_exit
      _

</llo_original>
